<compile_context>
chip_gen: v7x
topology: tpu7x:2x2x1
jax: 0.10.0
libtpu: 0.0.40
codegen_flags: <defaults>
</compile_context>

<pallas_src>
import math

import jax
import jax.numpy as jnp
from jax import lax
from jax.experimental import pallas as pl
from jax.experimental.pallas import tpu as pltpu


_LANE = 128      # vreg lane width: feature dims zero-padded to a multiple of this
_SUBLANE = 8     # vreg sublane width: node / edge counts padded to a multiple of this


def _round_up(x, m):
    return ((x + m - 1) // m) * m


# ----------------------------------------------------------------------------
# Fused Pallas kernel: gc1 (node) -> gc2 (edge) -> gc3 (node) in one body.
# Shapes are small, so every operand lives whole in VMEM (no grid / tiling).
# ----------------------------------------------------------------------------

def _gcn_fused_kernel(x_ref, z_ref, adj_v_ref, adj_e_ref, t_ref, tt_ref,
                      w1_ref, b1_ref, p1_ref,
                      w2_ref, b2_ref, p2_ref,
                      w3_ref, b3_ref, p3_ref,
                      out_ref):
    x = x_ref[...]          # (N, F)  node features (feature dim zero-padded to F)
    z = z_ref[...]          # (E, F)  edge features
    adj_v = adj_v_ref[...]  # (N, N)
    adj_e = adj_e_ref[...]  # (E, E)
    t = t_ref[...]          # (N, E)  incidence matrix
    tt = tt_ref[...]        # (E, N)  incidence matrix transposed (host-side glue)

    n = adj_v.shape[0]
    e = adj_e.shape[0]
    diag_n = (lax.broadcasted_iota(jnp.int32, (n, n), 0)
              == lax.broadcasted_iota(jnp.int32, (n, n), 1))
    diag_e = (lax.broadcasted_iota(jnp.int32, (e, e), 0)
              == lax.broadcasted_iota(jnp.int32, (e, e), 1))

    def node_layer(hv, he, w, b, p):
        # s[j] = <He[j,:], p> on the VPU (mul) + XLU (lane reduce); keeps the
        # rank-1 product off the MXU critical path feeding the mult matmul.
        s_col = jnp.sum(he * p, axis=1, keepdims=True)                      # (E, 1)
        # mult = T @ diag(s) @ T^T  ==  T @ (s ⊙_rows T^T)
        mult = jnp.dot(t, s_col * tt, preferred_element_type=jnp.float32)   # (N, N)
        m = jnp.where(diag_n, jnp.float32(1.0), mult)      # I + (1 - I) * mult
        a = m * adj_v
        hw = jnp.dot(hv, w, preferred_element_type=jnp.float32)             # (N, F)
        return jnp.dot(a, hw, preferred_element_type=jnp.float32) + b

    def edge_layer(hv, he, w, b, p):
        d_col = jnp.sum(hv * p, axis=1, keepdims=True)                      # (N, 1)
        # mult = T^T @ diag(d) @ T  ==  T^T @ (d ⊙_rows T)
        mult = jnp.dot(tt, d_col * t, preferred_element_type=jnp.float32)   # (E, E)
        m = jnp.where(diag_e, jnp.float32(1.0), mult)
        a = m * adj_e
        col_max = jnp.max(a, axis=0, keepdims=True)                         # (1, E)
        # Guard all-zero (padded) columns; for valid inputs (adj_e has self
        # loops so col_max >= 1 on real columns) the guard is a no-op.
        safe = jnp.where(col_max > 0.0, col_max, jnp.float32(1.0))
        # Exact reciprocal of the (1,E) row + broadcast multiply — cheaper than
        # an (E,E) divide and introduces no approximation error.
        a = a * pl.reciprocal(safe)
        hw = jnp.dot(he, w, preferred_element_type=jnp.float32)             # (E, F)
        return jnp.dot(a, hw, preferred_element_type=jnp.float32) + b

    x1 = node_layer(x, z, w1_ref[...], b1_ref[...], p1_ref[...])            # gc1
    z2 = edge_layer(x1, z, w2_ref[...], b2_ref[...], p2_ref[...])           # gc2
    out_ref[...] = node_layer(x1, z2, w3_ref[...], b3_ref[...], p3_ref[...])  # gc3


# ----------------------------------------------------------------------------
# Host-side wrapper: pad to TPU-friendly shapes, run the fused kernel, slice back.
# Zero-padding of features / nodes / edges is mathematically exact here (padded
# rows/columns never contaminate the real output block: T / adj rows & columns
# for padded nodes/edges are zero, and padded weight/bias/p entries are zero).
# ----------------------------------------------------------------------------

def _pad2d(a, rows, cols):
    return jnp.pad(a, ((0, rows - a.shape[0]), (0, cols - a.shape[1])))


@jax.jit
def gcn_forward(params, X, Z, adj_e, adj_v, T):
    n, nfeat_v = X.shape
    e, nfeat_e = Z.shape
    nhid = params["W1"].shape[1]

    n_p = _round_up(n, _SUBLANE)
    e_p = _round_up(e, _SUBLANE)
    f = _round_up(max(nfeat_v, nfeat_e, nhid), _LANE)  # one lane-dense feature slab

    f32 = jnp.float32
    x_p = _pad2d(X.astype(f32), n_p, f)
    z_p = _pad2d(Z.astype(f32), e_p, f)
    adj_v_p = _pad2d(adj_v.astype(f32), n_p, n_p)
    adj_e_p = _pad2d(adj_e.astype(f32), e_p, e_p)
    t_p = _pad2d(T.astype(f32), n_p, e_p)
    tt_p = jnp.transpose(t_p)                     # layout glue, done once host-side

    def wpb(w, b, p):
        return (_pad2d(w.astype(f32), f, f),
                _pad2d(b.astype(f32).reshape(1, -1), 1, f),
                _pad2d(p.astype(f32), 1, f))

    w1, b1, p1 = wpb(params["W1"], params["b1"], params["p1"])
    w2, b2, p2 = wpb(params["W2"], params["b2"], params["p2"])
    w3, b3, p3 = wpb(params["W3"], params["b3"], params["p3"])

    operands = (x_p, z_p, adj_v_p, adj_e_p, t_p, tt_p,
                w1, b1, p1, w2, b2, p2, w3, b3, p3)

    # Rough roofline hint so XLA schedules around the opaque custom call.
    flops = 2 * (n_p * e_p * n_p + n_p * f * f + n_p * n_p * f)        # gc1
    flops += 2 * (e_p * n_p * e_p + e_p * f * f + e_p * e_p * f)       # gc2
    flops += 2 * (n_p * e_p * n_p + n_p * f * f + n_p * n_p * f)       # gc3
    bytes_accessed = sum(int(a.size) * 4 for a in operands) + n_p * f * 4

    vmem = pl.BlockSpec(memory_space=pltpu.MemorySpace.VMEM)
    out_p = pl.pallas_call(
        _gcn_fused_kernel,
        out_shape=jax.ShapeDtypeStruct((n_p, f), jnp.float32),
        in_specs=[vmem] * len(operands),
        out_specs=vmem,
        cost_estimate=pl.CostEstimate(flops=flops, transcendentals=e_p,
                                      bytes_accessed=bytes_accessed),
    )(*operands)

    return out_p[:n, :nfeat_v]


# ----------------------------------------------------------------------------
# Parameter init (deterministic, mirrors GraphConvolution.reset_parameters):
# W, b ~ U(-1/sqrt(out), 1/sqrt(out));  p ~ N(0, 1)
# ----------------------------------------------------------------------------

def init_gcn_params(key, nfeat_v, nfeat_e, nhid):
    ks = jax.random.split(key, 9)
    uni = lambda k, shape, s: jax.random.uniform(k, shape, jnp.float32, -s, s)

    s1 = 1.0 / math.sqrt(nhid)
    s2 = 1.0 / math.sqrt(nfeat_e)
    s3 = 1.0 / math.sqrt(nfeat_v)
    return {
        # gc1: node layer  nfeat_v -> nhid
        "W1": uni(ks[0], (nfeat_v, nhid), s1),
        "b1": uni(ks[1], (nhid,), s1),
        "p1": jax.random.normal(ks[2], (1, nfeat_e), jnp.float32),
        # gc2: edge layer  nfeat_e -> nfeat_e   (p acts on node features, dim nhid)
        "W2": uni(ks[3], (nfeat_e, nfeat_e), s2),
        "b2": uni(ks[4], (nfeat_e,), s2),
        "p2": jax.random.normal(ks[5], (1, nhid), jnp.float32),
        # gc3: node layer  nhid -> nfeat_v
        "W3": uni(ks[6], (nhid, nfeat_v), s3),
        "b3": uni(ks[7], (nfeat_v,), s3),
        "p3": jax.random.normal(ks[8], (1, nfeat_e), jnp.float32),
    }


# ----------------------------------------------------------------------------
# Pure-JAX reference (mirrors the PyTorch forward; used only for self-checking).
# All matmuls run at HIGHEST precision — the PyTorch reference is exact fp32, and
# XLA's DEFAULT (bf16-pass) MXU precision compounds past 1e-2 over three layers,
# which is what caused the previous false mismatch against the exact-f32 kernel.
# ----------------------------------------------------------------------------

def _hdot(a, b):
    return jnp.dot(a, b, precision=lax.Precision.HIGHEST)


def _ref_node(hv, he, adj_v, t, w, p, b):
    s = _hdot(he, p.T)[:, 0]                       # (E,)
    mult = _hdot(t * s[None, :], t.T)              # (N, N)
    eye = jnp.eye(mult.shape[0], dtype=jnp.float32)
    m = eye + (1.0 - eye) * mult
    return _hdot(m * adj_v, _hdot(hv, w)) + b


def _ref_edge(hv, he, adj_e, t, w, p, b):
    d = _hdot(hv, p.T)[:, 0]                       # (N,)
    mult = _hdot((t * d[:, None]).T, t)            # (E, E)
    eye = jnp.eye(mult.shape[0], dtype=jnp.float32)
    m = eye + (1.0 - eye) * mult
    a = m * adj_e
    a = a / jnp.max(a, axis=0, keepdims=True)      # unguarded, as in the original
    return _hdot(a, _hdot(he, w)) + b


def gcn_forward_ref(params, X, Z, adj_e, adj_v, T):
    X1 = _ref_node(X, Z, adj_v, T, params["W1"], params["p1"], params["b1"])
    Z2 = _ref_edge(X1, Z, adj_e, T, params["W2"], params["p2"], params["b2"])
    return _ref_node(X1, Z2, adj_v, T, params["W3"], params["p3"], params["b3"])


# ----------------------------------------------------------------------------

if __name__ == "__main__":
    key = jax.random.PRNGKey(0)
    k_x, k_z, k_t, k_av, k_ae, k_p = jax.random.split(key, 6)

    N, E = 16, 24            # graph nodes, edges
    nfeat_v, nfeat_e, nhid = 8, 6, 32

    X = jax.random.normal(k_x, (N, nfeat_v), jnp.float32)
    Z = jax.random.normal(k_z, (E, nfeat_e), jnp.float32)

    # node-edge incidence (0/1)
    T = (jax.random.uniform(k_t, (N, E)) < 0.25).astype(jnp.float32)

    # symmetric node adjacency with self loops
    av = (jax.random.uniform(k_av, (N, N)) < 0.3).astype(jnp.float32)
    adj_v = jnp.clip(av + av.T + jnp.eye(N, dtype=jnp.float32), 0.0, 1.0)

    # symmetric edge adjacency with self loops (diag=1 keeps column max >= 1)
    ae = (jax.random.uniform(k_ae, (E, E)) < 0.3).astype(jnp.float32)
    adj_e = jnp.clip(ae + ae.T + jnp.eye(E, dtype=jnp.float32), 0.0, 1.0)

    a_hyper = 0.5  # stored by the reference module; unused in its forward math
    params = init_gcn_params(k_p, nfeat_v, nfeat_e, nhid)

    out = gcn_forward(params, X, Z, adj_e, adj_v, T)
    out = jax.block_until_ready(out)

    ref = gcn_forward_ref(params, X, Z, adj_e, adj_v, T)
    assert out.shape == (N, nfeat_v)
    assert jnp.allclose(out, ref, rtol=1e-2, atol=1e-2), "Pallas output mismatch"

    print("KERNEL_OK")
</pallas_src>

<mosaic_0001>
module attributes {stable_mosaic.version = 11 : i64} {
  func.func @_gcn_fused_kernel(%arg0: memref<16x128xf32, #tpu.memory_space<vmem>>, %arg1: memref<24x128xf32, #tpu.memory_space<vmem>>, %arg2: memref<16x16xf32, #tpu.memory_space<vmem>>, %arg3: memref<24x24xf32, #tpu.memory_space<vmem>>, %arg4: memref<16x24xf32, #tpu.memory_space<vmem>>, %arg5: memref<24x16xf32, #tpu.memory_space<vmem>>, %arg6: memref<128x128xf32, #tpu.memory_space<vmem>>, %arg7: memref<1x128xf32, #tpu.memory_space<vmem>>, %arg8: memref<1x128xf32, #tpu.memory_space<vmem>>, %arg9: memref<128x128xf32, #tpu.memory_space<vmem>>, %arg10: memref<1x128xf32, #tpu.memory_space<vmem>>, %arg11: memref<1x128xf32, #tpu.memory_space<vmem>>, %arg12: memref<128x128xf32, #tpu.memory_space<vmem>>, %arg13: memref<1x128xf32, #tpu.memory_space<vmem>>, %arg14: memref<1x128xf32, #tpu.memory_space<vmem>>, %arg15: memref<16x128xf32, #tpu.memory_space<vmem>>) attributes {dimension_semantics = [], scalar_prefetch = 0 : i64, scratch_operands = 0 : i64, tpu.core_type = #tpu.core_type<tc>} {
    %c0 = arith.constant 0 : index
    %c0_0 = arith.constant 0 : index
    %0 = vector.load %arg0[%c0, %c0_0] : memref<16x128xf32, #tpu.memory_space<vmem>>, vector<16x128xf32>
    %c0_1 = arith.constant 0 : index
    %c0_2 = arith.constant 0 : index
    %1 = vector.load %arg1[%c0_1, %c0_2] : memref<24x128xf32, #tpu.memory_space<vmem>>, vector<24x128xf32>
    %c0_3 = arith.constant 0 : index
    %c0_4 = arith.constant 0 : index
    %2 = vector.load %arg2[%c0_3, %c0_4] : memref<16x16xf32, #tpu.memory_space<vmem>>, vector<16x16xf32>
    %c0_5 = arith.constant 0 : index
    %c0_6 = arith.constant 0 : index
    %3 = vector.load %arg3[%c0_5, %c0_6] : memref<24x24xf32, #tpu.memory_space<vmem>>, vector<24x24xf32>
    %c0_7 = arith.constant 0 : index
    %c0_8 = arith.constant 0 : index
    %4 = vector.load %arg4[%c0_7, %c0_8] : memref<16x24xf32, #tpu.memory_space<vmem>>, vector<16x24xf32>
    %c0_9 = arith.constant 0 : index
    %c0_10 = arith.constant 0 : index
    %5 = vector.load %arg5[%c0_9, %c0_10] : memref<24x16xf32, #tpu.memory_space<vmem>>, vector<24x16xf32>
    %6 = tpu.iota {dimensions = array<i32: 0>} : vector<16x16xi32>
    %7 = tpu.iota {dimensions = array<i32: 1>} : vector<16x16xi32>
    %8 = arith.cmpi eq, %6, %7 : vector<16x16xi32>
    %9 = tpu.iota {dimensions = array<i32: 0>} : vector<24x24xi32>
    %10 = tpu.iota {dimensions = array<i32: 1>} : vector<24x24xi32>
    %11 = arith.cmpi eq, %9, %10 : vector<24x24xi32>
    %c0_11 = arith.constant 0 : index
    %c0_12 = arith.constant 0 : index
    %12 = vector.load %arg6[%c0_11, %c0_12] : memref<128x128xf32, #tpu.memory_space<vmem>>, vector<128x128xf32>
    %c0_13 = arith.constant 0 : index
    %c0_14 = arith.constant 0 : index
    %13 = vector.load %arg7[%c0_13, %c0_14] : memref<1x128xf32, #tpu.memory_space<vmem>>, vector<1x128xf32>
    %c0_15 = arith.constant 0 : index
    %c0_16 = arith.constant 0 : index
    %14 = vector.load %arg8[%c0_15, %c0_16] : memref<1x128xf32, #tpu.memory_space<vmem>>, vector<1x128xf32>
    %15 = vector.broadcast %14 : vector<1x128xf32> to vector<24x128xf32>
    %16 = arith.mulf %1, %15 : vector<24x128xf32>
    %cst = arith.constant dense<0.000000e+00> : vector<24xf32>
    %17 = vector.multi_reduction <add>, %16, %cst [1] : vector<24x128xf32> to vector<24xf32>
    %18 = vector.shape_cast %17 : vector<24xf32> to vector<24x1xf32>
    %19 = vector.broadcast %18 : vector<24x1xf32> to vector<24x16xf32>
    %20 = arith.mulf %19, %5 : vector<24x16xf32>
    %cst_17 = arith.constant dense<0.000000e+00> : vector<16x16xf32>
    %21 = tpu.matmul %4, %20, %cst_17 {dimension_numbers = #tpu.dot_dimension_numbers<[1], [0], [0], [1], [0, 0, 1, 1], [], []>} : vector<16x24xf32>, vector<24x16xf32>, vector<16x16xf32> -> vector<16x16xf32>
    %cst_18 = arith.constant 1.000000e+00 : f32
    %22 = vector.broadcast %cst_18 : f32 to vector<16x16xf32>
    %23 = arith.select %8, %22, %21 : vector<16x16xi1>, vector<16x16xf32>
    %24 = arith.mulf %23, %2 : vector<16x16xf32>
    %cst_19 = arith.constant dense<0.000000e+00> : vector<16x128xf32>
    %25 = tpu.matmul %0, %12, %cst_19 {dimension_numbers = #tpu.dot_dimension_numbers<[1], [0], [0], [1], [0, 0, 1, 1], [], []>} : vector<16x128xf32>, vector<128x128xf32>, vector<16x128xf32> -> vector<16x128xf32>
    %cst_20 = arith.constant dense<0.000000e+00> : vector<16x128xf32>
    %26 = tpu.matmul %24, %25, %cst_20 {dimension_numbers = #tpu.dot_dimension_numbers<[1], [0], [0], [1], [0, 0, 1, 1], [], []>} : vector<16x16xf32>, vector<16x128xf32>, vector<16x128xf32> -> vector<16x128xf32>
    %27 = vector.broadcast %13 : vector<1x128xf32> to vector<16x128xf32>
    %28 = arith.addf %26, %27 : vector<16x128xf32>
    %c0_21 = arith.constant 0 : index
    %c0_22 = arith.constant 0 : index
    %29 = vector.load %arg9[%c0_21, %c0_22] : memref<128x128xf32, #tpu.memory_space<vmem>>, vector<128x128xf32>
    %c0_23 = arith.constant 0 : index
    %c0_24 = arith.constant 0 : index
    %30 = vector.load %arg10[%c0_23, %c0_24] : memref<1x128xf32, #tpu.memory_space<vmem>>, vector<1x128xf32>
    %c0_25 = arith.constant 0 : index
    %c0_26 = arith.constant 0 : index
    %31 = vector.load %arg11[%c0_25, %c0_26] : memref<1x128xf32, #tpu.memory_space<vmem>>, vector<1x128xf32>
    %32 = vector.broadcast %31 : vector<1x128xf32> to vector<16x128xf32>
    %33 = arith.mulf %28, %32 : vector<16x128xf32>
    %cst_27 = arith.constant dense<0.000000e+00> : vector<16xf32>
    %34 = vector.multi_reduction <add>, %33, %cst_27 [1] : vector<16x128xf32> to vector<16xf32>
    %35 = vector.shape_cast %34 : vector<16xf32> to vector<16x1xf32>
    %36 = vector.broadcast %35 : vector<16x1xf32> to vector<16x24xf32>
    %37 = arith.mulf %36, %4 : vector<16x24xf32>
    %cst_28 = arith.constant dense<0.000000e+00> : vector<24x24xf32>
    %38 = tpu.matmul %5, %37, %cst_28 {dimension_numbers = #tpu.dot_dimension_numbers<[1], [0], [0], [1], [0, 0, 1, 1], [], []>} : vector<24x16xf32>, vector<16x24xf32>, vector<24x24xf32> -> vector<24x24xf32>
    %cst_29 = arith.constant 1.000000e+00 : f32
    %39 = vector.broadcast %cst_29 : f32 to vector<24x24xf32>
    %40 = arith.select %11, %39, %38 : vector<24x24xi1>, vector<24x24xf32>
    %41 = arith.mulf %40, %3 : vector<24x24xf32>
    %cst_30 = arith.constant dense<0xFF800000> : vector<24xf32>
    %42 = vector.multi_reduction <maximumf>, %41, %cst_30 [0] : vector<24x24xf32> to vector<24xf32>
    %43 = vector.shape_cast %42 : vector<24xf32> to vector<1x24xf32>
    %cst_31 = arith.constant 0.000000e+00 : f32
    %44 = vector.broadcast %cst_31 : f32 to vector<1x24xf32>
    %45 = arith.cmpf ogt, %43, %44 : vector<1x24xf32>
    %cst_32 = arith.constant 1.000000e+00 : f32
    %46 = vector.broadcast %cst_32 : f32 to vector<1x24xf32>
    %47 = arith.select %45, %43, %46 : vector<1x24xi1>, vector<1x24xf32>
    %48 = tpu.reciprocal %47 : vector<1x24xf32> -> vector<1x24xf32>
    %49 = vector.broadcast %48 : vector<1x24xf32> to vector<24x24xf32>
    %50 = arith.mulf %41, %49 : vector<24x24xf32>
    %cst_33 = arith.constant dense<0.000000e+00> : vector<24x128xf32>
    %51 = tpu.matmul %1, %29, %cst_33 {dimension_numbers = #tpu.dot_dimension_numbers<[1], [0], [0], [1], [0, 0, 1, 1], [], []>} : vector<24x128xf32>, vector<128x128xf32>, vector<24x128xf32> -> vector<24x128xf32>
    %cst_34 = arith.constant dense<0.000000e+00> : vector<24x128xf32>
    %52 = tpu.matmul %50, %51, %cst_34 {dimension_numbers = #tpu.dot_dimension_numbers<[1], [0], [0], [1], [0, 0, 1, 1], [], []>} : vector<24x24xf32>, vector<24x128xf32>, vector<24x128xf32> -> vector<24x128xf32>
    %53 = vector.broadcast %30 : vector<1x128xf32> to vector<24x128xf32>
    %54 = arith.addf %52, %53 : vector<24x128xf32>
    %c0_35 = arith.constant 0 : index
    %c0_36 = arith.constant 0 : index
    %55 = vector.load %arg12[%c0_35, %c0_36] : memref<128x128xf32, #tpu.memory_space<vmem>>, vector<128x128xf32>
    %c0_37 = arith.constant 0 : index
    %c0_38 = arith.constant 0 : index
    %56 = vector.load %arg13[%c0_37, %c0_38] : memref<1x128xf32, #tpu.memory_space<vmem>>, vector<1x128xf32>
    %c0_39 = arith.constant 0 : index
    %c0_40 = arith.constant 0 : index
    %57 = vector.load %arg14[%c0_39, %c0_40] : memref<1x128xf32, #tpu.memory_space<vmem>>, vector<1x128xf32>
    %58 = vector.broadcast %57 : vector<1x128xf32> to vector<24x128xf32>
    %59 = arith.mulf %54, %58 : vector<24x128xf32>
    %cst_41 = arith.constant dense<0.000000e+00> : vector<24xf32>
    %60 = vector.multi_reduction <add>, %59, %cst_41 [1] : vector<24x128xf32> to vector<24xf32>
    %61 = vector.shape_cast %60 : vector<24xf32> to vector<24x1xf32>
    %62 = vector.broadcast %61 : vector<24x1xf32> to vector<24x16xf32>
    %63 = arith.mulf %62, %5 : vector<24x16xf32>
    %cst_42 = arith.constant dense<0.000000e+00> : vector<16x16xf32>
    %64 = tpu.matmul %4, %63, %cst_42 {dimension_numbers = #tpu.dot_dimension_numbers<[1], [0], [0], [1], [0, 0, 1, 1], [], []>} : vector<16x24xf32>, vector<24x16xf32>, vector<16x16xf32> -> vector<16x16xf32>
    %cst_43 = arith.constant 1.000000e+00 : f32
    %65 = vector.broadcast %cst_43 : f32 to vector<16x16xf32>
    %66 = arith.select %8, %65, %64 : vector<16x16xi1>, vector<16x16xf32>
    %67 = arith.mulf %66, %2 : vector<16x16xf32>
    %cst_44 = arith.constant dense<0.000000e+00> : vector<16x128xf32>
    %68 = tpu.matmul %28, %55, %cst_44 {dimension_numbers = #tpu.dot_dimension_numbers<[1], [0], [0], [1], [0, 0, 1, 1], [], []>} : vector<16x128xf32>, vector<128x128xf32>, vector<16x128xf32> -> vector<16x128xf32>
    %cst_45 = arith.constant dense<0.000000e+00> : vector<16x128xf32>
    %69 = tpu.matmul %67, %68, %cst_45 {dimension_numbers = #tpu.dot_dimension_numbers<[1], [0], [0], [1], [0, 0, 1, 1], [], []>} : vector<16x16xf32>, vector<16x128xf32>, vector<16x128xf32> -> vector<16x128xf32>
    %70 = vector.broadcast %56 : vector<1x128xf32> to vector<16x128xf32>
    %71 = arith.addf %69, %70 : vector<16x128xf32>
    %c0_46 = arith.constant 0 : index
    %c0_47 = arith.constant 0 : index
    %72 = vector.load %arg15[%c0_46, %c0_47] : memref<16x128xf32, #tpu.memory_space<vmem>>, vector<16x128xf32>
    tpu.vector_store %arg15[%c0_46, %c0_47], %71 {strides = array<i32>} : memref<16x128xf32, #tpu.memory_space<vmem>>, vector<16x128xf32>,
    return
  }
}

</mosaic_0001>

<llo_original>
// kernel: gcn_forward.1
$region0: #{gcn_forward.1}
  #allocation0 [shape = 'u32[]', space=smem, size = 0x4, offset = 0x4, fixed_abs, tag = 'smem constant byte address 0x4 - core index']
  #allocation1 [shape = 'u32[144,128]{1,0:T(1,128)}', space=vmem, size = 0x12000, scoped, tag = 'internal scratch']
  %s0 = inlined_call_operand.vmem [shape: f32[16,128], index: 0, kind: input, shape index: {}]
  %s1 = inlined_call_operand.vmem [shape: f32[24,128], index: 1, kind: input, shape index: {}]
  %s2 = inlined_call_operand.vmem [shape: f32[16,16], index: 2, kind: input, shape index: {}]
  %s3 = inlined_call_operand.vmem [shape: f32[24,24], index: 3, kind: input, shape index: {}]
  %s4 = inlined_call_operand.vmem [shape: f32[16,24], index: 4, kind: input, shape index: {}]
  %s5 = inlined_call_operand.vmem [shape: f32[24,16], index: 5, kind: input, shape index: {}]
  %s6 = inlined_call_operand.vmem [shape: f32[128,128], index: 6, kind: input, shape index: {}]
  %s7 = inlined_call_operand.vmem [shape: f32[1,128], index: 7, kind: input, shape index: {}]
  %s8 = inlined_call_operand.vmem [shape: f32[1,128], index: 8, kind: input, shape index: {}]
  %s9 = inlined_call_operand.vmem [shape: f32[128,128], index: 9, kind: input, shape index: {}]
  %s10 = inlined_call_operand.vmem [shape: f32[1,128], index: 10, kind: input, shape index: {}]
  %s11 = inlined_call_operand.vmem [shape: f32[1,128], index: 11, kind: input, shape index: {}]
  %s12 = inlined_call_operand.vmem [shape: f32[128,128], index: 12, kind: input, shape index: {}]
  %s13 = inlined_call_operand.vmem [shape: f32[1,128], index: 13, kind: input, shape index: {}]
  %s14 = inlined_call_operand.vmem [shape: f32[1,128], index: 14, kind: input, shape index: {}]
  %s15 = inlined_call_operand.vmem [shape: f32[16,128], index: 15, kind: output, shape index: {}]
  %s16 = sld [smem:[#allocation0]]
  $region70: #{gcn_forward.1} parent=0
    _
  %s18 = ssub.s32 1, %s16
  %s19 = scalar_select 0, %s18, %s16
  // Predicated region
  $region2: #{gcn_forward.1} parent=0 // pred_check
    _
  $region3: #{gcn_forward.1} parent=0 // pred_check_branch
    %21 = sbr.rel (0) target = $region5
  $region4: #{gcn_forward.1} parent=0 // pred_region
    _
  $region5: #{gcn_forward.1} parent=0 // pred_fallthru
    _
  // Predicated region
  $region6: #{gcn_forward.1} parent=0 // pred_check
    _
  $region7: #{gcn_forward.1} parent=0 // pred_check_branch
    %23 = sbr.rel (0) target = $region9
  $region8: #{gcn_forward.1} parent=0 // pred_region
    _
  $region9: #{gcn_forward.1} parent=0 // pred_fallthru
    _
  // Predicated region
  $region10: #{gcn_forward.1} parent=0 // pred_check
    _
  $region11: #{gcn_forward.1} parent=0 // pred_check_branch
    %25 = sbr.rel (0) target = $region13
  $region12: #{gcn_forward.1} parent=0 // pred_region
    _
  $region13: #{gcn_forward.1} parent=0 // pred_fallthru
    _
  // Predicated region
  $region14: #{gcn_forward.1} parent=0 // pred_check
    _
  $region15: #{gcn_forward.1} parent=0 // pred_check_branch
    %27 = sbr.rel (0) target = $region17
  $region16: #{gcn_forward.1} parent=0 // pred_region
    _
  $region17: #{gcn_forward.1} parent=0 // pred_fallthru
    _
  // Predicated region
  $region18: #{gcn_forward.1} parent=0 // pred_check
    _
  $region19: #{gcn_forward.1} parent=0 // pred_check_branch
    %29 = sbr.rel (0) target = $region21
  $region20: #{gcn_forward.1} parent=0 // pred_region
    _
  $region21: #{gcn_forward.1} parent=0 // pred_fallthru
    _
  // Predicated region
  $region22: #{gcn_forward.1} parent=0 // pred_check
    _
  $region23: #{gcn_forward.1} parent=0 // pred_check_branch
    %31 = sbr.rel (0) target = $region25
  $region24: #{gcn_forward.1} parent=0 // pred_region
    _
  $region25: #{gcn_forward.1} parent=0 // pred_fallthru
    _
  // Predicated region
  $region26: #{gcn_forward.1} parent=0 // pred_check
    _
  $region27: #{gcn_forward.1} parent=0 // pred_check_branch
    %33 = sbr.rel (0) target = $region29
  $region28: #{gcn_forward.1} parent=0 // pred_region
    _
  $region29: #{gcn_forward.1} parent=0 // pred_fallthru
    _
  // Predicated region
  $region30: #{gcn_forward.1} parent=0 // pred_check
    _
  $region31: #{gcn_forward.1} parent=0 // pred_check_branch
    %35 = sbr.rel (0) target = $region33
  $region32: #{gcn_forward.1} parent=0 // pred_region
    _
  $region33: #{gcn_forward.1} parent=0 // pred_fallthru
    _
  // Predicated region
  $region34: #{gcn_forward.1} parent=0 // pred_check
    _
  $region35: #{gcn_forward.1} parent=0 // pred_check_branch
    %37 = sbr.rel (0) target = $region37
  $region36: #{gcn_forward.1} parent=0 // pred_region
    _
  $region37: #{gcn_forward.1} parent=0 // pred_fallthru
    _
  // Predicated region
  $region38: #{gcn_forward.1} parent=0 // pred_check
    _
  $region39: #{gcn_forward.1} parent=0 // pred_check_branch
    %39 = sbr.rel (0) target = $region41
  $region40: #{gcn_forward.1} parent=0 // pred_region
    _
  $region41: #{gcn_forward.1} parent=0 // pred_fallthru
    _
  // Predicated region
  $region42: #{gcn_forward.1} parent=0 // pred_check
    _
  $region43: #{gcn_forward.1} parent=0 // pred_check_branch
    %41 = sbr.rel (0) target = $region45
  $region44: #{gcn_forward.1} parent=0 // pred_region
    _
  $region45: #{gcn_forward.1} parent=0 // pred_fallthru
    _
  // Predicated region
  $region46: #{gcn_forward.1} parent=0 // pred_check
    _
  $region47: #{gcn_forward.1} parent=0 // pred_check_branch
    %43 = sbr.rel (0) target = $region49
  $region48: #{gcn_forward.1} parent=0 // pred_region
    _
  $region49: #{gcn_forward.1} parent=0 // pred_fallthru
    _
  // Predicated region
  $region50: #{gcn_forward.1} parent=0 // pred_check
    _
  $region51: #{gcn_forward.1} parent=0 // pred_check_branch
    %45 = sbr.rel (0) target = $region53
  $region52: #{gcn_forward.1} parent=0 // pred_region
    _
  $region53: #{gcn_forward.1} parent=0 // pred_fallthru
    _
  // Predicated region
  $region54: #{gcn_forward.1} parent=0 // pred_check
    _
  $region55: #{gcn_forward.1} parent=0 // pred_check_branch
    %47 = sbr.rel (0) target = $region57
  $region56: #{gcn_forward.1} parent=0 // pred_region
    _
  $region57: #{gcn_forward.1} parent=0 // pred_fallthru
    _
  // Predicated region
  $region58: #{gcn_forward.1} parent=0 // pred_check
    _
  $region59: #{gcn_forward.1} parent=0 // pred_check_branch
    %49 = sbr.rel (0) target = $region61
  $region60: #{gcn_forward.1} parent=0 // pred_region
    _
  $region61: #{gcn_forward.1} parent=0 // pred_fallthru
    _
  %v50 = vld [vmem:[%s0] sm:$0xff]
  %v51 = vld [vmem:[%s0 + $0x8] sm:$0xff]
  %v52 = vld [vmem:[%s1] sm:$0xff]
  %v53 = vld [vmem:[%s1 + $0x8] sm:$0xff]
  %v54 = vld [vmem:[%s1 + $0x10] sm:$0xff]
  %v55 = vld [vmem:[%s2] sm:$0xff]
  %v56 = vld [vmem:[%s2 + $0x8] sm:$0xff]
  %v57 = vld [vmem:[%s3] sm:$0xff]
  %v58 = vld [vmem:[%s3 + $0x8] sm:$0xff]
  %v59 = vld [vmem:[%s3 + $0x10] sm:$0xff]
  %v60 = vld [vmem:[%s4] sm:$0xff]
  %v61 = vld [vmem:[%s4 + $0x8] sm:$0xff]
  %v62 = vld [vmem:[%s5] sm:$0xff]
  %v63 = vld [vmem:[%s5 + $0x8] sm:$0xff]
  %v64 = vld [vmem:[%s5 + $0x10] sm:$0xff]
  %v65 = vlaneseq
  %v66 = vshrl.u32 %v65, 7
  %v67 = vadd.s32 %v66, 8
  %v68 = vlaneseq
  %v69 = vand.u32 %v68, 127
  %vm70 = vcmp.eq.s32.totalorder %v66, %v69
  %vm71 = vcmp.eq.s32.totalorder %v67, %v69
  %v72 = vadd.s32 %v66, 16
  %vm73 = vcmp.eq.s32.totalorder %v72, %v69
  %v74 = vld [vmem:[%s6] sm:$0xff]
  %v75 = vld [vmem:[%s6 + $0x8] sm:$0xff]
  %v76 = vld [vmem:[%s6 + $0x10] sm:$0xff]
  %v77 = vld [vmem:[%s6 + $0x18] sm:$0xff]
  %v78 = vld [vmem:[%s6 + $0x20] sm:$0xff]
  %v79 = vld [vmem:[%s6 + $0x28] sm:$0xff]
  %v80 = vld [vmem:[%s6 + $0x30] sm:$0xff]
  %v81 = vld [vmem:[%s6 + $0x38] sm:$0xff]
  %v82 = vld [vmem:[%s6 + $0x40] sm:$0xff]
  %v83 = vld [vmem:[%s6 + $0x48] sm:$0xff]
  %v84 = vld [vmem:[%s6 + $0x50] sm:$0xff]
  %v85 = vld [vmem:[%s6 + $0x58] sm:$0xff]
  %v86 = vld [vmem:[%s6 + $0x60] sm:$0xff]
  %v87 = vld [vmem:[%s6 + $0x68] sm:$0xff]
  %v88 = vld [vmem:[%s6 + $0x70] sm:$0xff]
  %v89 = vld [vmem:[%s6 + $0x78] sm:$0xff]
  %v90 = vld [vmem:[%s7] sm:$0x1]
  %v91 = vld [vmem:[%s8] sm:$0x1]
  %v93 = vlaneseq
  %v94 = vshrl.u32 %v93, 7
  %v95 = vsub.s32 0, %v94
  %v96 = vrot.slane %v91, %v95
  %v98 = vmul.f32 %v52, %v96
  %v99 = vmul.f32 %v53, %v96
  %v100 = vmul.f32 %v54, %v96
  %101 = vadd.xlane.f32.xlu0 %v98
  %v102 = vpop.xlane.xlu0 %101
  %103 = vadd.xlane.f32.xlu0 %v99
  %v104 = vpop.xlane.xlu0 %103
  %105 = vadd.xlane.f32.xlu0 %v100
  %v106 = vpop.xlane.xlu0 %105
  %v107 = vmul.f32 %v102, %v62
  %v108 = vmul.f32 %v104, %v63
  %v109 = vmul.f32 %v106, %v64
  %vm110 = vcmask 195584
  %v112 = vsel %vm110, %v60, 0
  %v115 = vsel %vm110, %v61, 0
  %117 = vmatprep.subr.mxu0 0.0
  %118 = vmatpush1.msra.mxu0 %v107
  %119 = vmatprep.subr.mxu0 0.0
  %120 = vmatpush1.msra.mxu0 %v108
  %121 = vmatprep.subr.mxu0 0.0
  %122 = vmatpush1.msra.mxu0 %v109
  %123 = vmatprep.subr.mxu0 0.0
  %124 = vmatpush1.msra.mxu0 0.0
  %125 = vmatprep.subr.mxu0 0.0
  %126 = vmatpush1.msra.mxu0 0.0
  %127 = vmatprep.subr.mxu0 0.0
  %128 = vmatpush1.msra.mxu0 0.0
  %129 = vmatprep.subr.mxu0 0.0
  %130 = vmatpush1.msra.mxu0 0.0
  %131 = vmatprep.subr.mxu0 0.0
  %132 = vmatpush1.msra.mxu0 0.0
  %133 = vmatprep.subr.mxu0 0.0
  %134 = vmatpush1.msra.mxu0 0.0
  %135 = vmatprep.subr.mxu0 0.0
  %136 = vmatpush1.msra.mxu0 0.0
  %137 = vmatprep.subr.mxu0 0.0
  %138 = vmatpush1.msra.mxu0 0.0
  %139 = vmatprep.subr.mxu0 0.0
  %140 = vmatpush1.msra.mxu0 0.0
  %141 = vmatprep.subr.mxu0 0.0
  %142 = vmatpush1.msra.mxu0 0.0
  %143 = vmatprep.subr.mxu0 0.0
  %144 = vmatpush1.msra.mxu0 0.0
  %145 = vmatprep.subr.mxu0 0.0
  %146 = vmatpush1.msra.mxu0 0.0
  %147 = vmatprep.subr.mxu0 0.0
  %148 = vmatpush1.msra.mxu0 0.0
  %149 = vmatprep.subr.mxu0 0.0
  %150 = vmatpush1.msra.mxu0 0.0
  %151 = vmatprep.subr.mxu0 0.0
  %152 = vmatpush1.msra.mxu0 0.0
  %153 = vmatprep.subr.mxu0 0.0
  %154 = vmatpush1.msra.mxu0 0.0
  %155 = vmatprep.subr.mxu0 0.0
  %156 = vmatpush1.msra.mxu0 0.0
  %157 = vmatprep.subr.mxu0 0.0
  %158 = vmatpush1.msra.mxu0 0.0
  %159 = vmatprep.subr.mxu0 0.0
  %160 = vmatpush1.msra.mxu0 0.0
  %161 = vmatprep.subr.mxu0 0.0
  %162 = vmatpush1.msra.mxu0 0.0
  %163 = vmatprep.subr.mxu0 0.0
  %164 = vmatpush1.msra.mxu0 0.0
  %165 = vmatprep.subr.mxu0 0.0
  %166 = vmatpush1.msra.mxu0 0.0
  %167 = vmatprep.subr.mxu0 0.0
  %168 = vmatpush1.msra.mxu0 0.0
  %169 = vmatprep.subr.mxu0 0.0
  %170 = vmatpush1.msra.mxu0 0.0
  %171 = vmatprep.subr.mxu0 0.0
  %172 = vmatpush1.msra.mxu0 0.0
  %173 = vmatprep.subr.mxu0 0.0
  %174 = vmatpush1.msra.mxu0 0.0
  %175 = vmatprep.subr.mxu0 0.0
  %176 = vmatpush1.msra.mxu0 0.0
  %177 = vmatprep.subr.mxu0 0.0
  %178 = vmatpush1.msra.mxu0 0.0
  %179 = vmatprep.subr.mxu0 0.0
  %180 = vmatpush1.msra.mxu0 0.0
  %181 = vmatprep.mubr.f32.mxu0 0.0
  %182 = vmatmul.mubr.f32.gmra.mrb[0].mxu0 %v112
  %v183 = vpop.f32.mrb[0].mxu0
  %v184 = vadd.f32 0.0, %v183
  %v185 = vpop.f32.mrb[0].mxu0
  %186 = vmatprep.mubr.f32.mxu0 0.0
  %187 = vmatmul.mubr.f32.gmra.mrb[0].mxu0 %v115
  %v188 = vpop.f32.mrb[0].mxu0
  %v189 = vadd.f32 0.0, %v188
  %v190 = vpop.f32.mrb[0].mxu0
  %191 = vdwg.mxu0
  %v192 = vsel %vm70, 1.0, %v184
  %v193 = vsel %vm71, 1.0, %v189
  %v194 = vmul.f32 %v192, %v55
  %v195 = vmul.f32 %v193, %v56
  %196 = vmatprep.subr.mxu0 0.0
  %197 = vmatpush1.msra.mxu0 %v74
  %198 = vmatprep.subr.mxu0 0.0
  %199 = vmatpush1.msra.mxu0 %v75
  %200 = vmatprep.subr.mxu0 0.0
  %201 = vmatpush1.msra.mxu0 %v76
  %202 = vmatprep.subr.mxu0 0.0
  %203 = vmatpush1.msra.mxu0 %v77
  %204 = vmatprep.subr.mxu0 0.0
  %205 = vmatpush1.msra.mxu0 %v78
  %206 = vmatprep.subr.mxu0 0.0
  %207 = vmatpush1.msra.mxu0 %v79
  %208 = vmatprep.subr.mxu0 0.0
  %209 = vmatpush1.msra.mxu0 %v80
  %210 = vmatprep.subr.mxu0 0.0
  %211 = vmatpush1.msra.mxu0 %v81
  %212 = vmatprep.subr.mxu0 0.0
  %213 = vmatpush1.msra.mxu0 %v82
  %214 = vmatprep.subr.mxu0 0.0
  %215 = vmatpush1.msra.mxu0 %v83
  %216 = vmatprep.subr.mxu0 0.0
  %217 = vmatpush1.msra.mxu0 %v84
  %218 = vmatprep.subr.mxu0 0.0
  %219 = vmatpush1.msra.mxu0 %v85
  %220 = vmatprep.subr.mxu0 0.0
  %221 = vmatpush1.msra.mxu0 %v86
  %222 = vmatprep.subr.mxu0 0.0
  %223 = vmatpush1.msra.mxu0 %v87
  %224 = vmatprep.subr.mxu0 0.0
  %225 = vmatpush1.msra.mxu0 %v88
  %226 = vmatprep.subr.mxu0 0.0
  %227 = vmatpush1.msra.mxu0 %v89
  %228 = vmatprep.subr.mxu0 0.0
  %229 = vmatpush1.msra.mxu0 0.0
  %230 = vmatprep.subr.mxu0 0.0
  %231 = vmatpush1.msra.mxu0 0.0
  %232 = vmatprep.subr.mxu0 0.0
  %233 = vmatpush1.msra.mxu0 0.0
  %234 = vmatprep.subr.mxu0 0.0
  %235 = vmatpush1.msra.mxu0 0.0
  %236 = vmatprep.subr.mxu0 0.0
  %237 = vmatpush1.msra.mxu0 0.0
  %238 = vmatprep.subr.mxu0 0.0
  %239 = vmatpush1.msra.mxu0 0.0
  %240 = vmatprep.subr.mxu0 0.0
  %241 = vmatpush1.msra.mxu0 0.0
  %242 = vmatprep.subr.mxu0 0.0
  %243 = vmatpush1.msra.mxu0 0.0
  %244 = vmatprep.subr.mxu0 0.0
  %245 = vmatpush1.msra.mxu0 0.0
  %246 = vmatprep.subr.mxu0 0.0
  %247 = vmatpush1.msra.mxu0 0.0
  %248 = vmatprep.subr.mxu0 0.0
  %249 = vmatpush1.msra.mxu0 0.0
  %250 = vmatprep.subr.mxu0 0.0
  %251 = vmatpush1.msra.mxu0 0.0
  %252 = vmatprep.subr.mxu0 0.0
  %253 = vmatpush1.msra.mxu0 0.0
  %254 = vmatprep.subr.mxu0 0.0
  %255 = vmatpush1.msra.mxu0 0.0
  %256 = vmatprep.subr.mxu0 0.0
  %257 = vmatpush1.msra.mxu0 0.0
  %258 = vmatprep.subr.mxu0 0.0
  %259 = vmatpush1.msra.mxu0 0.0
  %260 = vmatprep.mubr.f32.mxu0 0.0
  %261 = vmatmul.mubr.f32.gmra.mrb[0].mxu0 %v50
  %v262 = vpop.f32.mrb[0].mxu0
  %v263 = vadd.f32 0.0, %v262
  %v264 = vpop.f32.mrb[0].mxu0
  %265 = vmatprep.mubr.f32.mxu0 0.0
  %266 = vmatmul.mubr.f32.gmra.mrb[0].mxu0 %v51
  %v267 = vpop.f32.mrb[0].mxu0
  %v268 = vadd.f32 0.0, %v267
  %v269 = vpop.f32.mrb[0].mxu0
  %270 = vdwg.mxu0
  %v272 = vlaneseq
  %v273 = vshrl.u32 %v272, 7
  %v274 = vsub.s32 0, %v273
  %v275 = vrot.slane %v90, %v274
  %vm277 = vcmask 130048
  %v279 = vsel %vm277, %v194, 0
  %v282 = vsel %vm277, %v195, 0
  %284 = vmatprep.subr.mxu0 0.0
  %285 = vmatpush1.msra.mxu0 %v263
  %286 = vmatprep.subr.mxu0 0.0
  %287 = vmatpush1.msra.mxu0 %v268
  %288 = vmatprep.subr.mxu0 0.0
  %289 = vmatpush1.msra.mxu0 0.0
  %290 = vmatprep.subr.mxu0 0.0
  %291 = vmatpush1.msra.mxu0 0.0
  %292 = vmatprep.subr.mxu0 0.0
  %293 = vmatpush1.msra.mxu0 0.0
  %294 = vmatprep.subr.mxu0 0.0
  %295 = vmatpush1.msra.mxu0 0.0
  %296 = vmatprep.subr.mxu0 0.0
  %297 = vmatpush1.msra.mxu0 0.0
  %298 = vmatprep.subr.mxu0 0.0
  %299 = vmatpush1.msra.mxu0 0.0
  %300 = vmatprep.subr.mxu0 0.0
  %301 = vmatpush1.msra.mxu0 0.0
  %302 = vmatprep.subr.mxu0 0.0
  %303 = vmatpush1.msra.mxu0 0.0
  %304 = vmatprep.subr.mxu0 0.0
  %305 = vmatpush1.msra.mxu0 0.0
  %306 = vmatprep.subr.mxu0 0.0
  %307 = vmatpush1.msra.mxu0 0.0
  %308 = vmatprep.subr.mxu0 0.0
  %309 = vmatpush1.msra.mxu0 0.0
  %310 = vmatprep.subr.mxu0 0.0
  %311 = vmatpush1.msra.mxu0 0.0
  %312 = vmatprep.subr.mxu0 0.0
  %313 = vmatpush1.msra.mxu0 0.0
  %314 = vmatprep.subr.mxu0 0.0
  %315 = vmatpush1.msra.mxu0 0.0
  %316 = vmatprep.subr.mxu0 0.0
  %317 = vmatpush1.msra.mxu0 0.0
  %318 = vmatprep.subr.mxu0 0.0
  %319 = vmatpush1.msra.mxu0 0.0
  %320 = vmatprep.subr.mxu0 0.0
  %321 = vmatpush1.msra.mxu0 0.0
  %322 = vmatprep.subr.mxu0 0.0
  %323 = vmatpush1.msra.mxu0 0.0
  %324 = vmatprep.subr.mxu0 0.0
  %325 = vmatpush1.msra.mxu0 0.0
  %326 = vmatprep.subr.mxu0 0.0
  %327 = vmatpush1.msra.mxu0 0.0
  %328 = vmatprep.subr.mxu0 0.0
  %329 = vmatpush1.msra.mxu0 0.0
  %330 = vmatprep.subr.mxu0 0.0
  %331 = vmatpush1.msra.mxu0 0.0
  %332 = vmatprep.subr.mxu0 0.0
  %333 = vmatpush1.msra.mxu0 0.0
  %334 = vmatprep.subr.mxu0 0.0
  %335 = vmatpush1.msra.mxu0 0.0
  %336 = vmatprep.subr.mxu0 0.0
  %337 = vmatpush1.msra.mxu0 0.0
  %338 = vmatprep.subr.mxu0 0.0
  %339 = vmatpush1.msra.mxu0 0.0
  %340 = vmatprep.subr.mxu0 0.0
  %341 = vmatpush1.msra.mxu0 0.0
  %342 = vmatprep.subr.mxu0 0.0
  %343 = vmatpush1.msra.mxu0 0.0
  %344 = vmatprep.subr.mxu0 0.0
  %345 = vmatpush1.msra.mxu0 0.0
  %346 = vmatprep.subr.mxu0 0.0
  %347 = vmatpush1.msra.mxu0 0.0
  %348 = vmatprep.mubr.f32.mxu0 0.0
  %349 = vmatmul.mubr.f32.gmra.mrb[0].mxu0 %v279
  %v350 = vpop.f32.mrb[0].mxu0
  %v351 = vadd.f32 %v275, %v350
  %v352 = vpop.f32.mrb[0].mxu0
  %353 = vmatprep.mubr.f32.mxu0 0.0
  %354 = vmatmul.mubr.f32.gmra.mrb[0].mxu0 %v282
  %v355 = vpop.f32.mrb[0].mxu0
  %v356 = vadd.f32 %v275, %v355
  %v357 = vpop.f32.mrb[0].mxu0
  %358 = vdwg.mxu0
  %v359 = vld [vmem:[%s9] sm:$0xff]
  %v360 = vld [vmem:[%s9 + $0x8] sm:$0xff]
  %v361 = vld [vmem:[%s9 + $0x10] sm:$0xff]
  %v362 = vld [vmem:[%s9 + $0x18] sm:$0xff]
  %v363 = vld [vmem:[%s9 + $0x20] sm:$0xff]
  %v364 = vld [vmem:[%s9 + $0x28] sm:$0xff]
  %v365 = vld [vmem:[%s9 + $0x30] sm:$0xff]
  %v366 = vld [vmem:[%s9 + $0x38] sm:$0xff]
  %v367 = vld [vmem:[%s9 + $0x40] sm:$0xff]
  %v368 = vld [vmem:[%s9 + $0x48] sm:$0xff]
  %v369 = vld [vmem:[%s9 + $0x50] sm:$0xff]
  %v370 = vld [vmem:[%s9 + $0x58] sm:$0xff]
  %v371 = vld [vmem:[%s9 + $0x60] sm:$0xff]
  %v372 = vld [vmem:[%s9 + $0x68] sm:$0xff]
  %v373 = vld [vmem:[%s9 + $0x70] sm:$0xff]
  %v374 = vld [vmem:[%s9 + $0x78] sm:$0xff]
  %v375 = vld [vmem:[%s10] sm:$0x1]
  %v376 = vld [vmem:[%s11] sm:$0x1]
  %v378 = vlaneseq
  %v379 = vshrl.u32 %v378, 7
  %v380 = vsub.s32 0, %v379
  %v381 = vrot.slane %v376, %v380
  %v383 = vmul.f32 %v351, %v381
  %v384 = vmul.f32 %v356, %v381
  %385 = vadd.xlane.f32.xlu0 %v383
  %v386 = vpop.xlane.xlu0 %385
  %387 = vadd.xlane.f32.xlu0 %v384
  %v388 = vpop.xlane.xlu0 %387
  %v389 = vmul.f32 %v386, %v60
  %v390 = vmul.f32 %v388, %v61
  %v392 = vsel %vm277, %v62, 0
  %v395 = vsel %vm277, %v63, 0
  %v398 = vsel %vm277, %v64, 0
  %400 = vmatprep.subr.mxu0 0.0
  %401 = vmatpush1.msra.mxu0 %v389
  %402 = vmatprep.subr.mxu0 0.0
  %403 = vmatpush1.msra.mxu0 %v390
  %404 = vmatprep.subr.mxu0 0.0
  %405 = vmatpush1.msra.mxu0 0.0
  %406 = vmatprep.subr.mxu0 0.0
  %407 = vmatpush1.msra.mxu0 0.0
  %408 = vmatprep.subr.mxu0 0.0
  %409 = vmatpush1.msra.mxu0 0.0
  %410 = vmatprep.subr.mxu0 0.0
  %411 = vmatpush1.msra.mxu0 0.0
  %412 = vmatprep.subr.mxu0 0.0
  %413 = vmatpush1.msra.mxu0 0.0
  %414 = vmatprep.subr.mxu0 0.0
  %415 = vmatpush1.msra.mxu0 0.0
  %416 = vmatprep.subr.mxu0 0.0
  %417 = vmatpush1.msra.mxu0 0.0
  %418 = vmatprep.subr.mxu0 0.0
  %419 = vmatpush1.msra.mxu0 0.0
  %420 = vmatprep.subr.mxu0 0.0
  %421 = vmatpush1.msra.mxu0 0.0
  %422 = vmatprep.subr.mxu0 0.0
  %423 = vmatpush1.msra.mxu0 0.0
  %424 = vmatprep.subr.mxu0 0.0
  %425 = vmatpush1.msra.mxu0 0.0
  %426 = vmatprep.subr.mxu0 0.0
  %427 = vmatpush1.msra.mxu0 0.0
  %428 = vmatprep.subr.mxu0 0.0
  %429 = vmatpush1.msra.mxu0 0.0
  %430 = vmatprep.subr.mxu0 0.0
  %431 = vmatpush1.msra.mxu0 0.0
  %432 = vmatprep.subr.mxu0 0.0
  %433 = vmatpush1.msra.mxu0 0.0
  %434 = vmatprep.subr.mxu0 0.0
  %435 = vmatpush1.msra.mxu0 0.0
  %436 = vmatprep.subr.mxu0 0.0
  %437 = vmatpush1.msra.mxu0 0.0
  %438 = vmatprep.subr.mxu0 0.0
  %439 = vmatpush1.msra.mxu0 0.0
  %440 = vmatprep.subr.mxu0 0.0
  %441 = vmatpush1.msra.mxu0 0.0
  %442 = vmatprep.subr.mxu0 0.0
  %443 = vmatpush1.msra.mxu0 0.0
  %444 = vmatprep.subr.mxu0 0.0
  %445 = vmatpush1.msra.mxu0 0.0
  %446 = vmatprep.subr.mxu0 0.0
  %447 = vmatpush1.msra.mxu0 0.0
  %448 = vmatprep.subr.mxu0 0.0
  %449 = vmatpush1.msra.mxu0 0.0
  %450 = vmatprep.subr.mxu0 0.0
  %451 = vmatpush1.msra.mxu0 0.0
  %452 = vmatprep.subr.mxu0 0.0
  %453 = vmatpush1.msra.mxu0 0.0
  %454 = vmatprep.subr.mxu0 0.0
  %455 = vmatpush1.msra.mxu0 0.0
  %456 = vmatprep.subr.mxu0 0.0
  %457 = vmatpush1.msra.mxu0 0.0
  %458 = vmatprep.subr.mxu0 0.0
  %459 = vmatpush1.msra.mxu0 0.0
  %460 = vmatprep.subr.mxu0 0.0
  %461 = vmatpush1.msra.mxu0 0.0
  %462 = vmatprep.subr.mxu0 0.0
  %463 = vmatpush1.msra.mxu0 0.0
  %464 = vmatprep.mubr.f32.mxu0 0.0
  %465 = vmatmul.mubr.f32.gmra.mrb[0].mxu0 %v392
  %v466 = vpop.f32.mrb[0].mxu0
  %v467 = vadd.f32 0.0, %v466
  %v468 = vpop.f32.mrb[0].mxu0
  %469 = vmatprep.mubr.f32.mxu0 0.0
  %470 = vmatmul.mubr.f32.gmra.mrb[0].mxu0 %v395
  %v471 = vpop.f32.mrb[0].mxu0
  %v472 = vadd.f32 0.0, %v471
  %v473 = vpop.f32.mrb[0].mxu0
  %474 = vmatprep.mubr.f32.mxu0 0.0
  %475 = vmatmul.mubr.f32.gmra.mrb[0].mxu0 %v398
  %v476 = vpop.f32.mrb[0].mxu0
  %v477 = vadd.f32 0.0, %v476
  %v478 = vpop.f32.mrb[0].mxu0
  %479 = vdwg.mxu0
  %v480 = vsel %vm70, 1.0, %v467
  %v481 = vsel %vm71, 1.0, %v472
  %v482 = vsel %vm73, 1.0, %v477
  %v483 = vmul.f32 %v480, %v57
  %v484 = vmul.f32 %v481, %v58
  %v485 = vmul.f32 %v482, %v59
  %v486 = vsel %vm110, %v483, -inf
  %v487 = vsel %vm110, %v484, -inf
  %v488 = vsel %vm110, %v485, -inf
  %v489 = vmax.f32 %v486, %v487
  %v490 = vmax.f32 %v489, %v488
  %v491 = vrot.slane %v490, 4
  %v492 = vmax.f32 %v490, %v491
  %v493 = vrot.slane %v492, 2
  %v494 = vmax.f32 %v492, %v493
  %v495 = vrot.slane %v494, 1
  %v496 = vmax.f32 %v494, %v495
  %vm497 = vcmp.gt.f32.partialorder %v496, 0.0
  %v498 = vsel %vm497, %v496, 1.0
  %v499 = vrcp.pop %v498
  %v500 = vmul.f32 %v483, %v499
  %v501 = vmul.f32 %v484, %v499
  %v502 = vmul.f32 %v485, %v499
  %503 = vmatprep.subr.mxu0 0.0
  %504 = vmatpush1.msra.mxu0 %v359
  %505 = vmatprep.subr.mxu0 0.0
  %506 = vmatpush1.msra.mxu0 %v360
  %507 = vmatprep.subr.mxu0 0.0
  %508 = vmatpush1.msra.mxu0 %v361
  %509 = vmatprep.subr.mxu0 0.0
  %510 = vmatpush1.msra.mxu0 %v362
  %511 = vmatprep.subr.mxu0 0.0
  %512 = vmatpush1.msra.mxu0 %v363
  %513 = vmatprep.subr.mxu0 0.0
  %514 = vmatpush1.msra.mxu0 %v364
  %515 = vmatprep.subr.mxu0 0.0
  %516 = vmatpush1.msra.mxu0 %v365
  %517 = vmatprep.subr.mxu0 0.0
  %518 = vmatpush1.msra.mxu0 %v366
  %519 = vmatprep.subr.mxu0 0.0
  %520 = vmatpush1.msra.mxu0 %v367
  %521 = vmatprep.subr.mxu0 0.0
  %522 = vmatpush1.msra.mxu0 %v368
  %523 = vmatprep.subr.mxu0 0.0
  %524 = vmatpush1.msra.mxu0 %v369
  %525 = vmatprep.subr.mxu0 0.0
  %526 = vmatpush1.msra.mxu0 %v370
  %527 = vmatprep.subr.mxu0 0.0
  %528 = vmatpush1.msra.mxu0 %v371
  %529 = vmatprep.subr.mxu0 0.0
  %530 = vmatpush1.msra.mxu0 %v372
  %531 = vmatprep.subr.mxu0 0.0
  %532 = vmatpush1.msra.mxu0 %v373
  %533 = vmatprep.subr.mxu0 0.0
  %534 = vmatpush1.msra.mxu0 %v374
  %535 = vmatprep.subr.mxu0 0.0
  %536 = vmatpush1.msra.mxu0 0.0
  %537 = vmatprep.subr.mxu0 0.0
  %538 = vmatpush1.msra.mxu0 0.0
  %539 = vmatprep.subr.mxu0 0.0
  %540 = vmatpush1.msra.mxu0 0.0
  %541 = vmatprep.subr.mxu0 0.0
  %542 = vmatpush1.msra.mxu0 0.0
  %543 = vmatprep.subr.mxu0 0.0
  %544 = vmatpush1.msra.mxu0 0.0
  %545 = vmatprep.subr.mxu0 0.0
  %546 = vmatpush1.msra.mxu0 0.0
  %547 = vmatprep.subr.mxu0 0.0
  %548 = vmatpush1.msra.mxu0 0.0
  %549 = vmatprep.subr.mxu0 0.0
  %550 = vmatpush1.msra.mxu0 0.0
  %551 = vmatprep.subr.mxu0 0.0
  %552 = vmatpush1.msra.mxu0 0.0
  %553 = vmatprep.subr.mxu0 0.0
  %554 = vmatpush1.msra.mxu0 0.0
  %555 = vmatprep.subr.mxu0 0.0
  %556 = vmatpush1.msra.mxu0 0.0
  %557 = vmatprep.subr.mxu0 0.0
  %558 = vmatpush1.msra.mxu0 0.0
  %559 = vmatprep.subr.mxu0 0.0
  %560 = vmatpush1.msra.mxu0 0.0
  %561 = vmatprep.subr.mxu0 0.0
  %562 = vmatpush1.msra.mxu0 0.0
  %563 = vmatprep.subr.mxu0 0.0
  %564 = vmatpush1.msra.mxu0 0.0
  %565 = vmatprep.subr.mxu0 0.0
  %566 = vmatpush1.msra.mxu0 0.0
  %567 = vmatprep.mubr.f32.mxu0 0.0
  %568 = vmatmul.mubr.f32.gmra.mrb[0].mxu0 %v52
  %v569 = vpop.f32.mrb[0].mxu0
  %v570 = vadd.f32 0.0, %v569
  %v571 = vpop.f32.mrb[0].mxu0
  %572 = vmatprep.mubr.f32.mxu0 0.0
  %573 = vmatmul.mubr.f32.gmra.mrb[0].mxu0 %v53
  %v574 = vpop.f32.mrb[0].mxu0
  %v575 = vadd.f32 0.0, %v574
  %v576 = vpop.f32.mrb[0].mxu0
  %577 = vmatprep.mubr.f32.mxu0 0.0
  %578 = vmatmul.mubr.f32.gmra.mrb[0].mxu0 %v54
  %v579 = vpop.f32.mrb[0].mxu0
  %v580 = vadd.f32 0.0, %v579
  %v581 = vpop.f32.mrb[0].mxu0
  %582 = vdwg.mxu0
  %v584 = vlaneseq
  %v585 = vshrl.u32 %v584, 7
  %v586 = vsub.s32 0, %v585
  %v587 = vrot.slane %v375, %v586
  %v590 = vsel %vm110, %v500, 0
  %v593 = vsel %vm110, %v501, 0
  %v596 = vsel %vm110, %v502, 0
  %598 = vmatprep.subr.mxu0 0.0
  %599 = vmatpush1.msra.mxu0 %v570
  %600 = vmatprep.subr.mxu0 0.0
  %601 = vmatpush1.msra.mxu0 %v575
  %602 = vmatprep.subr.mxu0 0.0
  %603 = vmatpush1.msra.mxu0 %v580
  %604 = vmatprep.subr.mxu0 0.0
  %605 = vmatpush1.msra.mxu0 0.0
  %606 = vmatprep.subr.mxu0 0.0
  %607 = vmatpush1.msra.mxu0 0.0
  %608 = vmatprep.subr.mxu0 0.0
  %609 = vmatpush1.msra.mxu0 0.0
  %610 = vmatprep.subr.mxu0 0.0
  %611 = vmatpush1.msra.mxu0 0.0
  %612 = vmatprep.subr.mxu0 0.0
  %613 = vmatpush1.msra.mxu0 0.0
  %614 = vmatprep.subr.mxu0 0.0
  %615 = vmatpush1.msra.mxu0 0.0
  %616 = vmatprep.subr.mxu0 0.0
  %617 = vmatpush1.msra.mxu0 0.0
  %618 = vmatprep.subr.mxu0 0.0
  %619 = vmatpush1.msra.mxu0 0.0
  %620 = vmatprep.subr.mxu0 0.0
  %621 = vmatpush1.msra.mxu0 0.0
  %622 = vmatprep.subr.mxu0 0.0
  %623 = vmatpush1.msra.mxu0 0.0
  %624 = vmatprep.subr.mxu0 0.0
  %625 = vmatpush1.msra.mxu0 0.0
  %626 = vmatprep.subr.mxu0 0.0
  %627 = vmatpush1.msra.mxu0 0.0
  %628 = vmatprep.subr.mxu0 0.0
  %629 = vmatpush1.msra.mxu0 0.0
  %630 = vmatprep.subr.mxu0 0.0
  %631 = vmatpush1.msra.mxu0 0.0
  %632 = vmatprep.subr.mxu0 0.0
  %633 = vmatpush1.msra.mxu0 0.0
  %634 = vmatprep.subr.mxu0 0.0
  %635 = vmatpush1.msra.mxu0 0.0
  %636 = vmatprep.subr.mxu0 0.0
  %637 = vmatpush1.msra.mxu0 0.0
  %638 = vmatprep.subr.mxu0 0.0
  %639 = vmatpush1.msra.mxu0 0.0
  %640 = vmatprep.subr.mxu0 0.0
  %641 = vmatpush1.msra.mxu0 0.0
  %642 = vmatprep.subr.mxu0 0.0
  %643 = vmatpush1.msra.mxu0 0.0
  %644 = vmatprep.subr.mxu0 0.0
  %645 = vmatpush1.msra.mxu0 0.0
  %646 = vmatprep.subr.mxu0 0.0
  %647 = vmatpush1.msra.mxu0 0.0
  %648 = vmatprep.subr.mxu0 0.0
  %649 = vmatpush1.msra.mxu0 0.0
  %650 = vmatprep.subr.mxu0 0.0
  %651 = vmatpush1.msra.mxu0 0.0
  %652 = vmatprep.subr.mxu0 0.0
  %653 = vmatpush1.msra.mxu0 0.0
  %654 = vmatprep.subr.mxu0 0.0
  %655 = vmatpush1.msra.mxu0 0.0
  %656 = vmatprep.subr.mxu0 0.0
  %657 = vmatpush1.msra.mxu0 0.0
  %658 = vmatprep.subr.mxu0 0.0
  %659 = vmatpush1.msra.mxu0 0.0
  %660 = vmatprep.subr.mxu0 0.0
  %661 = vmatpush1.msra.mxu0 0.0
  %662 = vmatprep.mubr.f32.mxu0 0.0
  %663 = vmatmul.mubr.f32.gmra.mrb[0].mxu0 %v590
  %v664 = vpop.f32.mrb[0].mxu0
  %v665 = vadd.f32 %v587, %v664
  %v666 = vpop.f32.mrb[0].mxu0
  %667 = vmatprep.mubr.f32.mxu0 0.0
  %668 = vmatmul.mubr.f32.gmra.mrb[0].mxu0 %v593
  %v669 = vpop.f32.mrb[0].mxu0
  %v670 = vadd.f32 %v587, %v669
  %v671 = vpop.f32.mrb[0].mxu0
  %672 = vmatprep.mubr.f32.mxu0 0.0
  %673 = vmatmul.mubr.f32.gmra.mrb[0].mxu0 %v596
  %v674 = vpop.f32.mrb[0].mxu0
  %v675 = vadd.f32 %v587, %v674
  %v676 = vpop.f32.mrb[0].mxu0
  %677 = vdwg.mxu0
  %v678 = vld [vmem:[%s12] sm:$0xff]
  %v679 = vld [vmem:[%s12 + $0x8] sm:$0xff]
  %v680 = vld [vmem:[%s12 + $0x10] sm:$0xff]
  %v681 = vld [vmem:[%s12 + $0x18] sm:$0xff]
  %v682 = vld [vmem:[%s12 + $0x20] sm:$0xff]
  %v683 = vld [vmem:[%s12 + $0x28] sm:$0xff]
  %v684 = vld [vmem:[%s12 + $0x30] sm:$0xff]
  %v685 = vld [vmem:[%s12 + $0x38] sm:$0xff]
  %v686 = vld [vmem:[%s12 + $0x40] sm:$0xff]
  %v687 = vld [vmem:[%s12 + $0x48] sm:$0xff]
  %v688 = vld [vmem:[%s12 + $0x50] sm:$0xff]
  %v689 = vld [vmem:[%s12 + $0x58] sm:$0xff]
  %v690 = vld [vmem:[%s12 + $0x60] sm:$0xff]
  %v691 = vld [vmem:[%s12 + $0x68] sm:$0xff]
  %v692 = vld [vmem:[%s12 + $0x70] sm:$0xff]
  %v693 = vld [vmem:[%s12 + $0x78] sm:$0xff]
  %v694 = vld [vmem:[%s13] sm:$0x1]
  %v695 = vld [vmem:[%s14] sm:$0x1]
  %v697 = vlaneseq
  %v698 = vshrl.u32 %v697, 7
  %v699 = vsub.s32 0, %v698
  %v700 = vrot.slane %v695, %v699
  %v702 = vmul.f32 %v665, %v700
  %v703 = vmul.f32 %v670, %v700
  %v704 = vmul.f32 %v675, %v700
  %705 = vadd.xlane.f32.xlu0 %v702
  %v706 = vpop.xlane.xlu0 %705
  %707 = vadd.xlane.f32.xlu0 %v703
  %v708 = vpop.xlane.xlu0 %707
  %709 = vadd.xlane.f32.xlu0 %v704
  %v710 = vpop.xlane.xlu0 %709
  %v711 = vmul.f32 %v706, %v62
  %v712 = vmul.f32 %v708, %v63
  %v713 = vmul.f32 %v710, %v64
  %714 = vmatprep.subr.mxu0 0.0
  %715 = vmatpush1.msra.mxu0 %v711
  %716 = vmatprep.subr.mxu0 0.0
  %717 = vmatpush1.msra.mxu0 %v712
  %718 = vmatprep.subr.mxu0 0.0
  %719 = vmatpush1.msra.mxu0 %v713
  %720 = vmatprep.subr.mxu0 0.0
  %721 = vmatpush1.msra.mxu0 0.0
  %722 = vmatprep.subr.mxu0 0.0
  %723 = vmatpush1.msra.mxu0 0.0
  %724 = vmatprep.subr.mxu0 0.0
  %725 = vmatpush1.msra.mxu0 0.0
  %726 = vmatprep.subr.mxu0 0.0
  %727 = vmatpush1.msra.mxu0 0.0
  %728 = vmatprep.subr.mxu0 0.0
  %729 = vmatpush1.msra.mxu0 0.0
  %730 = vmatprep.subr.mxu0 0.0
  %731 = vmatpush1.msra.mxu0 0.0
  %732 = vmatprep.subr.mxu0 0.0
  %733 = vmatpush1.msra.mxu0 0.0
  %734 = vmatprep.subr.mxu0 0.0
  %735 = vmatpush1.msra.mxu0 0.0
  %736 = vmatprep.subr.mxu0 0.0
  %737 = vmatpush1.msra.mxu0 0.0
  %738 = vmatprep.subr.mxu0 0.0
  %739 = vmatpush1.msra.mxu0 0.0
  %740 = vmatprep.subr.mxu0 0.0
  %741 = vmatpush1.msra.mxu0 0.0
  %742 = vmatprep.subr.mxu0 0.0
  %743 = vmatpush1.msra.mxu0 0.0
  %744 = vmatprep.subr.mxu0 0.0
  %745 = vmatpush1.msra.mxu0 0.0
  %746 = vmatprep.subr.mxu0 0.0
  %747 = vmatpush1.msra.mxu0 0.0
  %748 = vmatprep.subr.mxu0 0.0
  %749 = vmatpush1.msra.mxu0 0.0
  %750 = vmatprep.subr.mxu0 0.0
  %751 = vmatpush1.msra.mxu0 0.0
  %752 = vmatprep.subr.mxu0 0.0
  %753 = vmatpush1.msra.mxu0 0.0
  %754 = vmatprep.subr.mxu0 0.0
  %755 = vmatpush1.msra.mxu0 0.0
  %756 = vmatprep.subr.mxu0 0.0
  %757 = vmatpush1.msra.mxu0 0.0
  %758 = vmatprep.subr.mxu0 0.0
  %759 = vmatpush1.msra.mxu0 0.0
  %760 = vmatprep.subr.mxu0 0.0
  %761 = vmatpush1.msra.mxu0 0.0
  %762 = vmatprep.subr.mxu0 0.0
  %763 = vmatpush1.msra.mxu0 0.0
  %764 = vmatprep.subr.mxu0 0.0
  %765 = vmatpush1.msra.mxu0 0.0
  %766 = vmatprep.subr.mxu0 0.0
  %767 = vmatpush1.msra.mxu0 0.0
  %768 = vmatprep.subr.mxu0 0.0
  %769 = vmatpush1.msra.mxu0 0.0
  %770 = vmatprep.subr.mxu0 0.0
  %771 = vmatpush1.msra.mxu0 0.0
  %772 = vmatprep.subr.mxu0 0.0
  %773 = vmatpush1.msra.mxu0 0.0
  %774 = vmatprep.subr.mxu0 0.0
  %775 = vmatpush1.msra.mxu0 0.0
  %776 = vmatprep.subr.mxu0 0.0
  %777 = vmatpush1.msra.mxu0 0.0
  %778 = vmatprep.mubr.f32.mxu0 0.0
  %779 = vmatmul.mubr.f32.gmra.mrb[0].mxu0 %v112
  %v780 = vpop.f32.mrb[0].mxu0
  %v781 = vadd.f32 0.0, %v780
  %v782 = vpop.f32.mrb[0].mxu0
  %783 = vmatprep.mubr.f32.mxu0 0.0
  %784 = vmatmul.mubr.f32.gmra.mrb[0].mxu0 %v115
  %v785 = vpop.f32.mrb[0].mxu0
  %v786 = vadd.f32 0.0, %v785
  %v787 = vpop.f32.mrb[0].mxu0
  %788 = vdwg.mxu0
  %v789 = vsel %vm70, 1.0, %v781
  %v790 = vsel %vm71, 1.0, %v786
  %v791 = vmul.f32 %v789, %v55
  %v792 = vmul.f32 %v790, %v56
  %793 = vmatprep.subr.mxu0 0.0
  %794 = vmatpush1.msra.mxu0 %v678
  %795 = vmatprep.subr.mxu0 0.0
  %796 = vmatpush1.msra.mxu0 %v679
  %797 = vmatprep.subr.mxu0 0.0
  %798 = vmatpush1.msra.mxu0 %v680
  %799 = vmatprep.subr.mxu0 0.0
  %800 = vmatpush1.msra.mxu0 %v681
  %801 = vmatprep.subr.mxu0 0.0
  %802 = vmatpush1.msra.mxu0 %v682
  %803 = vmatprep.subr.mxu0 0.0
  %804 = vmatpush1.msra.mxu0 %v683
  %805 = vmatprep.subr.mxu0 0.0
  %806 = vmatpush1.msra.mxu0 %v684
  %807 = vmatprep.subr.mxu0 0.0
  %808 = vmatpush1.msra.mxu0 %v685
  %809 = vmatprep.subr.mxu0 0.0
  %810 = vmatpush1.msra.mxu0 %v686
  %811 = vmatprep.subr.mxu0 0.0
  %812 = vmatpush1.msra.mxu0 %v687
  %813 = vmatprep.subr.mxu0 0.0
  %814 = vmatpush1.msra.mxu0 %v688
  %815 = vmatprep.subr.mxu0 0.0
  %816 = vmatpush1.msra.mxu0 %v689
  %817 = vmatprep.subr.mxu0 0.0
  %818 = vmatpush1.msra.mxu0 %v690
  %819 = vmatprep.subr.mxu0 0.0
  %820 = vmatpush1.msra.mxu0 %v691
  %821 = vmatprep.subr.mxu0 0.0
  %822 = vmatpush1.msra.mxu0 %v692
  %823 = vmatprep.subr.mxu0 0.0
  %824 = vmatpush1.msra.mxu0 %v693
  %825 = vmatprep.subr.mxu0 0.0
  %826 = vmatpush1.msra.mxu0 0.0
  %827 = vmatprep.subr.mxu0 0.0
  %828 = vmatpush1.msra.mxu0 0.0
  %829 = vmatprep.subr.mxu0 0.0
  %830 = vmatpush1.msra.mxu0 0.0
  %831 = vmatprep.subr.mxu0 0.0
  %832 = vmatpush1.msra.mxu0 0.0
  %833 = vmatprep.subr.mxu0 0.0
  %834 = vmatpush1.msra.mxu0 0.0
  %835 = vmatprep.subr.mxu0 0.0
  %836 = vmatpush1.msra.mxu0 0.0
  %837 = vmatprep.subr.mxu0 0.0
  %838 = vmatpush1.msra.mxu0 0.0
  %839 = vmatprep.subr.mxu0 0.0
  %840 = vmatpush1.msra.mxu0 0.0
  %841 = vmatprep.subr.mxu0 0.0
  %842 = vmatpush1.msra.mxu0 0.0
  %843 = vmatprep.subr.mxu0 0.0
  %844 = vmatpush1.msra.mxu0 0.0
  %845 = vmatprep.subr.mxu0 0.0
  %846 = vmatpush1.msra.mxu0 0.0
  %847 = vmatprep.subr.mxu0 0.0
  %848 = vmatpush1.msra.mxu0 0.0
  %849 = vmatprep.subr.mxu0 0.0
  %850 = vmatpush1.msra.mxu0 0.0
  %851 = vmatprep.subr.mxu0 0.0
  %852 = vmatpush1.msra.mxu0 0.0
  %853 = vmatprep.subr.mxu0 0.0
  %854 = vmatpush1.msra.mxu0 0.0
  %855 = vmatprep.subr.mxu0 0.0
  %856 = vmatpush1.msra.mxu0 0.0
  %857 = vmatprep.mubr.f32.mxu0 0.0
  %858 = vmatmul.mubr.f32.gmra.mrb[0].mxu0 %v351
  %v859 = vpop.f32.mrb[0].mxu0
  %v860 = vadd.f32 0.0, %v859
  %v861 = vpop.f32.mrb[0].mxu0
  %862 = vmatprep.mubr.f32.mxu0 0.0
  %863 = vmatmul.mubr.f32.gmra.mrb[0].mxu0 %v356
  %v864 = vpop.f32.mrb[0].mxu0
  %v865 = vadd.f32 0.0, %v864
  %v866 = vpop.f32.mrb[0].mxu0
  %867 = vdwg.mxu0
  %v869 = vlaneseq
  %v870 = vshrl.u32 %v869, 7
  %v871 = vsub.s32 0, %v870
  %v872 = vrot.slane %v694, %v871
  %v875 = vsel %vm277, %v791, 0
  %v878 = vsel %vm277, %v792, 0
  %880 = vmatprep.subr.mxu0 0.0
  %881 = vmatpush1.msra.mxu0 %v860
  %882 = vmatprep.subr.mxu0 0.0
  %883 = vmatpush1.msra.mxu0 %v865
  %884 = vmatprep.subr.mxu0 0.0
  %885 = vmatpush1.msra.mxu0 0.0
  %886 = vmatprep.subr.mxu0 0.0
  %887 = vmatpush1.msra.mxu0 0.0
  %888 = vmatprep.subr.mxu0 0.0
  %889 = vmatpush1.msra.mxu0 0.0
  %890 = vmatprep.subr.mxu0 0.0
  %891 = vmatpush1.msra.mxu0 0.0
  %892 = vmatprep.subr.mxu0 0.0
  %893 = vmatpush1.msra.mxu0 0.0
  %894 = vmatprep.subr.mxu0 0.0
  %895 = vmatpush1.msra.mxu0 0.0
  %896 = vmatprep.subr.mxu0 0.0
  %897 = vmatpush1.msra.mxu0 0.0
  %898 = vmatprep.subr.mxu0 0.0
  %899 = vmatpush1.msra.mxu0 0.0
  %900 = vmatprep.subr.mxu0 0.0
  %901 = vmatpush1.msra.mxu0 0.0
  %902 = vmatprep.subr.mxu0 0.0
  %903 = vmatpush1.msra.mxu0 0.0
  %904 = vmatprep.subr.mxu0 0.0
  %905 = vmatpush1.msra.mxu0 0.0
  %906 = vmatprep.subr.mxu0 0.0
  %907 = vmatpush1.msra.mxu0 0.0
  %908 = vmatprep.subr.mxu0 0.0
  %909 = vmatpush1.msra.mxu0 0.0
  %910 = vmatprep.subr.mxu0 0.0
  %911 = vmatpush1.msra.mxu0 0.0
  %912 = vmatprep.subr.mxu0 0.0
  %913 = vmatpush1.msra.mxu0 0.0
  %914 = vmatprep.subr.mxu0 0.0
  %915 = vmatpush1.msra.mxu0 0.0
  %916 = vmatprep.subr.mxu0 0.0
  %917 = vmatpush1.msra.mxu0 0.0
  %918 = vmatprep.subr.mxu0 0.0
  %919 = vmatpush1.msra.mxu0 0.0
  %920 = vmatprep.subr.mxu0 0.0
  %921 = vmatpush1.msra.mxu0 0.0
  %922 = vmatprep.subr.mxu0 0.0
  %923 = vmatpush1.msra.mxu0 0.0
  %924 = vmatprep.subr.mxu0 0.0
  %925 = vmatpush1.msra.mxu0 0.0
  %926 = vmatprep.subr.mxu0 0.0
  %927 = vmatpush1.msra.mxu0 0.0
  %928 = vmatprep.subr.mxu0 0.0
  %929 = vmatpush1.msra.mxu0 0.0
  %930 = vmatprep.subr.mxu0 0.0
  %931 = vmatpush1.msra.mxu0 0.0
  %932 = vmatprep.subr.mxu0 0.0
  %933 = vmatpush1.msra.mxu0 0.0
  %934 = vmatprep.subr.mxu0 0.0
  %935 = vmatpush1.msra.mxu0 0.0
  %936 = vmatprep.subr.mxu0 0.0
  %937 = vmatpush1.msra.mxu0 0.0
  %938 = vmatprep.subr.mxu0 0.0
  %939 = vmatpush1.msra.mxu0 0.0
  %940 = vmatprep.subr.mxu0 0.0
  %941 = vmatpush1.msra.mxu0 0.0
  %942 = vmatprep.subr.mxu0 0.0
  %943 = vmatpush1.msra.mxu0 0.0
  %944 = vmatprep.mubr.f32.mxu0 0.0
  %945 = vmatmul.mubr.f32.gmra.mrb[0].mxu0 %v875
  %v946 = vpop.f32.mrb[0].mxu0
  %v947 = vadd.f32 %v872, %v946
  %v948 = vpop.f32.mrb[0].mxu0
  %949 = vmatprep.mubr.f32.mxu0 0.0
  %950 = vmatmul.mubr.f32.gmra.mrb[0].mxu0 %v878
  %v951 = vpop.f32.mrb[0].mxu0
  %v952 = vadd.f32 %v872, %v951
  %v953 = vpop.f32.mrb[0].mxu0
  %954 = vdwg.mxu0
  %955 = vst [vmem:[%s15] sm:$0xff] %v947
  %956 = vst [vmem:[%s15 + $0x8] sm:$0xff] %v952
  // Predicated region
  $region62: #{gcn_forward.1} parent=0 // pred_check
    _
  $region63: #{gcn_forward.1} parent=0 // pred_check_branch
    %958 = sbr.rel (0) target = $region65
  $region64: #{gcn_forward.1} parent=0 // pred_region
    _
  $region65: #{gcn_forward.1} parent=0 // pred_fallthru
    _
  // Predicated region
  $region66: #{gcn_forward.1} parent=0 // pred_check
    _
  $region67: #{gcn_forward.1} parent=0 // pred_check_branch
    %960 = sbr.rel (0) target = $region69
  $region68: #{gcn_forward.1} parent=0 // pred_region
    _
  $region69: #{gcn_forward.1} parent=0 // pred_fallthru
    _

</llo_original>
